<compile_context>
chip_gen: v6e
topology: v6e:2x2x1
jax: 0.10.0
libtpu: 0.0.40
codegen_flags: <defaults>
</compile_context>

<pallas_src>
import math
import functools

import jax
import jax.numpy as jnp
from jax.experimental import pallas as pl
from jax.experimental.pallas import tpu as pltpu


def _round_up(x, m):
    return ((x + m - 1) // m) * m


def _cdiv(a, b):
    return (a + b - 1) // b


# --------------------------------------------------------------------------- #
# Kernels
# --------------------------------------------------------------------------- #
def _linear_kernel_acc(x_ref, w_ref, b_ref, o_ref, acc_ref):
    """General path (nk > 1): f32 VMEM accumulator resident across the K axis."""
    k = pl.program_id(2)

    @pl.when(k == 0)
    def _():
        acc_ref[...] = jnp.zeros_like(acc_ref)

    # Keep the accumulate-into-resident-block form (maps onto v7x's MRB in-place
    # accumulate; plain FIFO pop + VPU add on v5e/v6e).
    acc_ref[...] += jnp.dot(
        x_ref[...], w_ref[...], preferred_element_type=jnp.float32
    )

    @pl.when(k == pl.num_programs(2) - 1)
    def _():
        o_ref[...] = (acc_ref[...] + b_ref[...]).astype(o_ref.dtype)


def _linear_kernel_single_k(x_ref, w_ref, b_ref, o_ref):
    """Fast path (K fits in one tile): no accumulator scratch, no init/epilogue
    round-trips — one dot, one bias add, one lane-dense store."""
    o_ref[...] = (
        jnp.dot(x_ref[...], w_ref[...], preferred_element_type=jnp.float32)
        + b_ref[...]
    ).astype(o_ref.dtype)


# --------------------------------------------------------------------------- #
# One-time parameter preparation (hoisted out of the forward path)
# --------------------------------------------------------------------------- #
def prepare_linear_params(weight, bias, *, tn=512, tk=2048,
                          compute_dtype=jnp.bfloat16):
    """Transpose weight to (K, N), cast to the MXU compute dtype, and zero-pad
    K / N to tile multiples.  Do this ONCE per layer at init time: doing it per
    forward call adds a full extra weight pass over HBM.

    weight: (out_features, in_features) — PyTorch convention.  bias: (out,)."""
    out_features, in_features = weight.shape

    # Lane-dense tiles; keep 256-multiples for the v6e/v7x 256x256 MXU whenever
    # the (padded) N extent allows it, 128 otherwise.
    n_lane = 256 if _round_up(out_features, 128) >= 256 else 128
    tk = min(tk, _round_up(in_features, 128))
    tn = min(tn, _round_up(out_features, n_lane))
    k_pad = _round_up(in_features, tk)
    n_pad = _round_up(out_features, tn)

    w_t = jnp.asarray(weight).T                      # (K, N) so the MXU consumes
    if compute_dtype is not None:                    # the contraction directly
        w_t = w_t.astype(compute_dtype)
    if (k_pad, n_pad) != (in_features, out_features):
        w_t = jnp.pad(w_t, ((0, k_pad - in_features), (0, n_pad - out_features)))

    b = jnp.asarray(bias).astype(jnp.float32)        # bias added in f32
    if n_pad != out_features:
        b = jnp.pad(b, (0, n_pad - out_features))
    b2d = b.reshape(1, n_pad)

    return {
        "w_t": w_t, "bias2d": b2d,
        "in_features": in_features, "out_features": out_features,
        "k_pad": k_pad, "n_pad": n_pad, "tk": tk, "tn": tn,
        "compute_dtype": compute_dtype,
    }


def _pick_tm(m, tm_max):
    """Choose an M tile: multiple of 8, <= tm_max, minimizing padded M rows
    (avoid e.g. m=300 padding to 512 just because tm=256)."""
    m8 = _round_up(m, 8)
    if m8 <= tm_max:
        return m8
    cands = sorted({c for c in (tm_max, 512, 384, 256, 128) if 8 <= c <= tm_max},
                   reverse=True)
    best, best_pad = cands[0], _round_up(m8, cands[0])
    for c in cands:
        pad = _round_up(m8, c)
        if pad < best_pad:
            best, best_pad = c, pad
    return best


# --------------------------------------------------------------------------- #
# Forward
# --------------------------------------------------------------------------- #
def linear_apply(x, params, *, tm=512):
    """y = x @ weight.T + bias using pre-prepared parameters."""
    in_features = params["in_features"]
    out_features = params["out_features"]
    k_pad, n_pad = params["k_pad"], params["n_pad"]
    tk, tn = params["tk"], params["tn"]
    compute_dtype = params["compute_dtype"]
    w_t, b2d = params["w_t"], params["bias2d"]

    assert x.shape[-1] == in_features
    out_dtype = x.dtype
    lead_shape = x.shape[:-1]
    x2d = x.reshape(-1, in_features)
    m = x2d.shape[0]

    tm_max = max(8, (int(tm) // 8) * 8)
    tm = _pick_tm(m, tm_max)
    m_pad = _round_up(_round_up(m, 8), tm)
    ni, nj, nk = m_pad // tm, n_pad // tn, k_pad // tk

    # v7x megacore: if there is only one (M, N) block but M is sizeable, split M
    # so both TensorCores get work (neutral on single-TC v5e/v6e).
    if ni == 1 and nj == 1 and m_pad >= 512:
        tm = _round_up(_cdiv(m_pad, 2), 8)
        m_pad = _round_up(_round_up(m, 8), tm)
        ni = m_pad // tm

    # Pad / cast the activation (zero K-padding contributes nothing to the dot;
    # padded M rows / N cols are sliced off below).
    if (m_pad, k_pad) != (m, in_features):
        x2d = jnp.pad(x2d, ((0, m_pad - m), (0, k_pad - in_features)))
    if compute_dtype is not None:
        x2d = x2d.astype(compute_dtype)

    x_itemsize = jnp.dtype(x2d.dtype).itemsize
    w_itemsize = jnp.dtype(w_t.dtype).itemsize
    out_itemsize = jnp.dtype(out_dtype).itemsize

    # Pick the grid order so the smaller operand is the one re-streamed from HBM.
    # (When nk == 1 the operand whose block index is constant across the middle
    # axis stays resident in VMEM and is DMA'd only once.)
    x_bytes = m_pad * k_pad * x_itemsize
    w_bytes = k_pad * n_pad * w_itemsize
    if nk == 1:
        traffic_n_outer = nj * x_bytes + w_bytes     # weight resident across i
        traffic_m_outer = x_bytes + ni * w_bytes     # x resident across j
    else:
        traffic_n_outer = nj * x_bytes + ni * w_bytes
        traffic_m_outer = traffic_n_outer
    n_outer = traffic_n_outer <= traffic_m_outer
    bytes_accessed = (min(traffic_n_outer, traffic_m_outer)
                      + n_pad * 4 + m_pad * n_pad * out_itemsize)

    if nk == 1:
        kernel = _linear_kernel_single_k
        scratch_shapes = []
        dim_sem = ("parallel", "parallel")
        if n_outer:
            grid = (nj, ni)
            x_map = lambda j, i: (i, 0)
            w_map = lambda j, i: (0, j)
            b_map = lambda j, i: (0, j)
            o_map = lambda j, i: (i, j)
        else:
            grid = (ni, nj)
            x_map = lambda i, j: (i, 0)
            w_map = lambda i, j: (0, j)
            b_map = lambda i, j: (0, j)
            o_map = lambda i, j: (i, j)
    else:
        kernel = _linear_kernel_acc
        scratch_shapes = [pltpu.VMEM((tm, tn), jnp.float32)]
        dim_sem = ("parallel", "parallel", "arbitrary")
        if n_outer:
            grid = (nj, ni, nk)
            x_map = lambda j, i, k: (i, k)
            w_map = lambda j, i, k: (k, j)
            b_map = lambda j, i, k: (0, j)
            o_map = lambda j, i, k: (i, j)
        else:
            grid = (ni, nj, nk)
            x_map = lambda i, j, k: (i, k)
            w_map = lambda i, j, k: (k, j)
            b_map = lambda i, j, k: (0, j)
            o_map = lambda i, j, k: (i, j)

    # VMEM budget: double-buffered inputs/outputs + f32 accumulator.  With the
    # default bf16 512/512/2048 tiles this is ~10 MiB — well under v7x's 64 MiB.
    footprint = (2 * tm * tk * x_itemsize
                 + 2 * tk * tn * w_itemsize
                 + 2 * tn * 4
                 + 2 * tm * tn * out_itemsize
                 + (tm * tn * 4 if nk > 1 else 0))
    vmem_limit = int(min(max(footprint + (8 << 20), 16 << 20), 64 << 20))

    cost = pl.CostEstimate(
        flops=2 * m_pad * n_pad * k_pad,
        transcendentals=0,
        bytes_accessed=int(bytes_accessed),
    )

    # TODO(synk): if profiles show exposed DMA at k-step boundaries with large tk,
    # sweep pipeline_mode=pl.Buffered(3) on the x / weight BlockSpecs.
    out = pl.pallas_call(
        kernel,
        out_shape=jax.ShapeDtypeStruct((m_pad, n_pad), out_dtype),
        grid_spec=pltpu.PrefetchScalarGridSpec(
            num_scalar_prefetch=0,
            grid=grid,
            in_specs=[
                pl.BlockSpec((tm, tk), x_map),   # x (padded, compute dtype)
                pl.BlockSpec((tk, tn), w_map),   # weight^T (pre-prepared)
                pl.BlockSpec((1, tn), b_map),    # bias (f32)
            ],
            out_specs=pl.BlockSpec((tm, tn), o_map),
            scratch_shapes=scratch_shapes,
        ),
        compiler_params=pltpu.CompilerParams(
            dimension_semantics=dim_sem,
            vmem_limit_bytes=vmem_limit,
        ),
        cost_estimate=cost,
    )(x2d, w_t, b2d)

    out = out[:m, :out_features]
    return out.reshape(*lead_shape, out_features)


def linear_forward(x, weight, bias, *, tm=512, tn=512, tk=2048,
                   compute_dtype=jnp.bfloat16):
    """Convenience wrapper: y = x @ weight.T + bias (F.linear semantics).

    Production use: call prepare_linear_params() ONCE per layer and reuse
    linear_apply() — the transpose/pad/cast here costs a full extra weight pass
    over HBM per call.  Numerics: with compute_dtype=bfloat16 the MXU operands
    are bf16 while accumulation stays f32 (differs from pure f32 at the
    ~1e-3..1e-2 relative level); pass compute_dtype=None for exact f32 inputs."""
    params = prepare_linear_params(weight, bias, tn=tn, tk=tk,
                                   compute_dtype=compute_dtype)
    return linear_apply(x, params, tm=tm)


def init_linear_params(key, in_features, out_features, dtype=jnp.float32):
    """Deterministic init mirroring the PyTorch module:
    weight ~ trunc_normal(mean=0, std=1/sqrt(in), a=-2*std, b=2*std), bias = 0."""
    sigma = 1.0 / math.sqrt(in_features)
    w = (
        jax.random.truncated_normal(
            key, -2.0, 2.0, (out_features, in_features), dtype=dtype
        )
        * sigma
    )
    b = jnp.zeros((out_features,), dtype=dtype)
    return w, b


if __name__ == "__main__":
    key = jax.random.PRNGKey(0)
    k_x, k_w, k_x2, k_w2, k_b2 = jax.random.split(key, 5)

    # Case 1: module-faithful small shape; K fits in one tile (fast-path kernel).
    batch, seq, in_features, out_features = 2, 8, 32, 64
    x = jax.random.normal(k_x, (batch, seq, in_features), dtype=jnp.float32)
    weight, bias = init_linear_params(k_w, in_features, out_features)

    params = prepare_linear_params(weight, bias)          # one-time per-layer prep
    fwd = jax.jit(functools.partial(linear_apply, params=params))
    y = jax.block_until_ready(fwd(x))
    y_ref = x @ weight.T + bias
    assert y.shape == (batch, seq, out_features)
    assert jnp.allclose(y, y_ref, atol=5e-2, rtol=5e-2), (
        "case1 max abs err", float(jnp.max(jnp.abs(y - y_ref))))

    # Case 2: multi-K-tile path (accumulator kernel), non-zero bias, nj > 1.
    m2, k2, n2 = 48, 512, 192
    x2 = jax.random.normal(k_x2, (m2, k2), dtype=jnp.float32)
    w2 = jax.random.normal(k_w2, (n2, k2), dtype=jnp.float32) / math.sqrt(k2)
    b2 = jax.random.normal(k_b2, (n2,), dtype=jnp.float32)
    y2 = jax.block_until_ready(linear_forward(x2, w2, b2, tn=128, tk=256))
    y2_ref = x2 @ w2.T + b2
    assert jnp.allclose(y2, y2_ref, atol=5e-2, rtol=5e-2), (
        "case2 max abs err", float(jnp.max(jnp.abs(y2 - y2_ref))))

    print("KERNEL_OK")
</pallas_src>

<mosaic_0001>
module attributes {stable_mosaic.version = 11 : i64} {
  func.func @_linear_kernel_single_k(%arg0: i32, %arg1: i32, %arg2: memref<16x128xbf16, #tpu.memory_space<vmem>>, %arg3: memref<128x128xbf16, #tpu.memory_space<vmem>>, %arg4: memref<1x128xf32, #tpu.memory_space<vmem>>, %arg5: memref<16x128xf32, #tpu.memory_space<vmem>>) attributes {dimension_semantics = [#tpu.dimension_semantics<parallel>, #tpu.dimension_semantics<parallel>], iteration_bounds = array<i64: 1, 1>, scalar_prefetch = 0 : i64, scratch_operands = 0 : i64, tpu.core_type = #tpu.core_type<tc>, window_params = [{transform_indices = @transform_0, window_bounds = array<i64: 16, 128>}, {transform_indices = @transform_1, window_bounds = array<i64: 128, 128>}, {transform_indices = @transform_2, window_bounds = array<i64: 1, 128>}, {transform_indices = @transform_3, window_bounds = array<i64: 16, 128>}]} {
    %c0 = arith.constant 0 : index
    %c0_0 = arith.constant 0 : index
    %0 = vector.load %arg2[%c0, %c0_0] : memref<16x128xbf16, #tpu.memory_space<vmem>>, vector<16x128xbf16>
    %c0_1 = arith.constant 0 : index
    %c0_2 = arith.constant 0 : index
    %1 = vector.load %arg3[%c0_1, %c0_2] : memref<128x128xbf16, #tpu.memory_space<vmem>>, vector<128x128xbf16>
    %cst = arith.constant dense<0.000000e+00> : vector<16x128xf32>
    %2 = tpu.matmul %0, %1, %cst {dimension_numbers = #tpu.dot_dimension_numbers<[1], [0], [0], [1], [0, 0, 1, 1], [], []>} : vector<16x128xbf16>, vector<128x128xbf16>, vector<16x128xf32> -> vector<16x128xf32>
    %c0_3 = arith.constant 0 : index
    %c0_4 = arith.constant 0 : index
    %3 = vector.load %arg4[%c0_3, %c0_4] : memref<1x128xf32, #tpu.memory_space<vmem>>, vector<1x128xf32>
    %4 = vector.broadcast %3 : vector<1x128xf32> to vector<16x128xf32>
    %5 = arith.addf %2, %4 : vector<16x128xf32>
    %c0_5 = arith.constant 0 : index
    %c0_6 = arith.constant 0 : index
    %6 = vector.load %arg5[%c0_5, %c0_6] : memref<16x128xf32, #tpu.memory_space<vmem>>, vector<16x128xf32>
    tpu.vector_store %arg5[%c0_5, %c0_6], %5 {strides = array<i32>} : memref<16x128xf32, #tpu.memory_space<vmem>>, vector<16x128xf32>,
    return
  }
  func.func @transform_0(%arg0: i32, %arg1: i32) -> (i32, i32) {
    %c0_i32 = arith.constant 0 : i32
    %c0_i32_0 = arith.constant 0 : i32
    return %arg1, %c0_i32 : i32, i32
  }
  func.func @transform_1(%arg0: i32, %arg1: i32) -> (i32, i32) {
    %c0_i32 = arith.constant 0 : i32
    %c0_i32_0 = arith.constant 0 : i32
    return %c0_i32, %arg0 : i32, i32
  }
  func.func @transform_2(%arg0: i32, %arg1: i32) -> (i32, i32) {
    %c0_i32 = arith.constant 0 : i32
    %c0_i32_0 = arith.constant 0 : i32
    return %c0_i32, %arg0 : i32, i32
  }
  func.func @transform_3(%arg0: i32, %arg1: i32) -> (i32, i32) {
    %c0_i32 = arith.constant 0 : i32
    return %arg1, %arg0 : i32, i32
  }
}

</mosaic_0001>

<llo_original>
// kernel: linear_apply.1
$region0: #{linear_apply.1}
  #allocation0 [shape = 'u32[]', space=smem, size = 0x4, offset = 0x4, fixed_abs, tag = 'smem constant byte address 0x4 - core index']
  #allocation1 [shape = 'u32[144,128]{1,0:T(1,128)}', space=vmem, size = 0x12000, scoped, tag = 'internal scratch']
  %s0 = inlined_call_operand.vmem [shape: bf16[16,128], index: 0, kind: input, shape index: {}]
  %s1 = inlined_call_operand.hbm [shape: bf16[128,128], index: 1, kind: input, shape index: {}]
  %s2 = inlined_call_operand.vmem [shape: f32[1,128], index: 2, kind: input, shape index: {}]
  %s3 = inlined_call_operand.vmem [shape: f32[16,128], index: 3, kind: output, shape index: {}]
  %s4 = sld [smem:[#allocation0]]
  $region26: #{linear_apply.1} parent=0
    _
  %s6 = ssub.s32 1, %s4
  %s7 = scalar_select 0, %s6, %s4
  $region1: #{linear_apply.1} parent=0
    #allocation2 [shape = 'u8[32768]{0}', space=vmem, size = 0x8000, scoped, tag = 'input window, operand 1, single buffered']
    #allocation3 [shape = 's32[1]{0}', space=sflag, size = 0x4, scoped, tag = 'scoped memory for linear_apply.1']
    %8 = vsyncpa [#allocation3], 0
    // Predicated region
    $region2: #{linear_apply.1} parent=1 // pred_check
      _
    $region3: #{linear_apply.1} parent=1 // pred_check_branch
      %10 = sbr.rel (0) target = $region5
    $region4: #{linear_apply.1} parent=1 // pred_region
      _
    $region5: #{linear_apply.1} parent=1 // pred_fallthru
      _
    // Predicated region
    $region6: #{linear_apply.1} parent=1 // pred_check
      _
    $region7: #{linear_apply.1} parent=1 // pred_check_branch
      %12 = sbr.rel (0) target = $region9
    $region8: #{linear_apply.1} parent=1 // pred_region
      %s14 = ssub.s32 1024, 1024
      %15 = vsyncadd [#allocation3], %s14
      %s16 = sshll.u32 [#allocation2], 4
      %s17 = int_to_ptr.vmem [resolvable:$true] %s16
      %22 = dma.hbm_to_vmem [thread:$0]  %s1, 1024, %s17, [#allocation3], 64, 64, 4
    $region9: #{linear_apply.1} parent=1 // pred_fallthru
      _
    // Predicated region
    $region10: #{linear_apply.1} parent=1 // pred_check
      _
    $region11: #{linear_apply.1} parent=1 // pred_check_branch
      %24 = sbr.rel (0) target = $region13
    $region12: #{linear_apply.1} parent=1 // pred_region
      _
    $region13: #{linear_apply.1} parent=1 // pred_fallthru
      _
    // Predicated region
    $region14: #{linear_apply.1} parent=1 // pred_check
      _
    $region15: #{linear_apply.1} parent=1 // pred_check_branch
      %26 = sbr.rel (0) target = $region17
    $region16: #{linear_apply.1} parent=1 // pred_region
      %27 = dma.done [#allocation3], 1024
    $region17: #{linear_apply.1} parent=1 // pred_fallthru
      _
    %v29 = vld [vmem:[%s0] sm:$0xf]
    %v30 = vld [vmem:[%s0 + $0x4] sm:$0xf]
    %v31 = vld [vmem:[#allocation2] sm:$0xf]
    %v32 = vld [vmem:[#allocation2 + $0x4] sm:$0xf]
    %v33 = vld [vmem:[#allocation2 + $0x8] sm:$0xf]
    %v34 = vld [vmem:[#allocation2 + $0xc] sm:$0xf]
    %v35 = vld [vmem:[#allocation2 + $0x10] sm:$0xf]
    %v36 = vld [vmem:[#allocation2 + $0x14] sm:$0xf]
    %v37 = vld [vmem:[#allocation2 + $0x18] sm:$0xf]
    %v38 = vld [vmem:[#allocation2 + $0x1c] sm:$0xf]
    %v39 = vld [vmem:[#allocation2 + $0x20] sm:$0xf]
    %v40 = vld [vmem:[#allocation2 + $0x24] sm:$0xf]
    %v41 = vld [vmem:[#allocation2 + $0x28] sm:$0xf]
    %v42 = vld [vmem:[#allocation2 + $0x2c] sm:$0xf]
    %v43 = vld [vmem:[#allocation2 + $0x30] sm:$0xf]
    %v44 = vld [vmem:[#allocation2 + $0x34] sm:$0xf]
    %v45 = vld [vmem:[#allocation2 + $0x38] sm:$0xf]
    %v46 = vld [vmem:[#allocation2 + $0x3c] sm:$0xf]
    %v47 = vld [vmem:[%s2] sm:$0x1]
    %v49 = vlaneseq
    %v50 = vshrl.u32 %v49, 7
    %v51 = vsub.s32 0, %v50
    %v52 = vrot.slane %v47, %v51
    %v56 = vunpack.c.l.b16 %v29
    %v57 = vunpack.c.l.b16 %v30
    %v58 = vpack.c.b16 %v57, %v56
    %v76 = vunpack.c.l.b16 %v31
    %v77 = vunpack.c.l.b16 %v32
    %v78 = vunpack.c.l.b16 %v33
    %v79 = vunpack.c.l.b16 %v34
    %v80 = vunpack.c.l.b16 %v35
    %v81 = vunpack.c.l.b16 %v36
    %v82 = vunpack.c.l.b16 %v37
    %v83 = vunpack.c.l.b16 %v38
    %v84 = vunpack.c.l.b16 %v39
    %v85 = vunpack.c.l.b16 %v40
    %v86 = vunpack.c.l.b16 %v41
    %v87 = vunpack.c.l.b16 %v42
    %v88 = vunpack.c.l.b16 %v43
    %v89 = vunpack.c.l.b16 %v44
    %v90 = vunpack.c.l.b16 %v45
    %v91 = vunpack.c.l.b16 %v46
    %v92 = vpack.c.b16 %v77, %v76
    %v93 = vpack.c.b16 %v79, %v78
    %v94 = vpack.c.b16 %v81, %v80
    %v95 = vpack.c.b16 %v83, %v82
    %v96 = vpack.c.b16 %v85, %v84
    %v97 = vpack.c.b16 %v87, %v86
    %v98 = vpack.c.b16 %v89, %v88
    %v99 = vpack.c.b16 %v91, %v90
    %108 = vmatprep.subr.bf16.mxu0 0
    %109 = vmatpush1.bf16.msra.mxu0 %v99
    %110 = vmatprep.subr.bf16.mxu0 0
    %111 = vmatpush1.bf16.msra.mxu0 %v98
    %112 = vmatprep.subr.bf16.mxu0 0
    %113 = vmatpush1.bf16.msra.mxu0 %v97
    %114 = vmatprep.subr.bf16.mxu0 0
    %115 = vmatpush1.bf16.msra.mxu0 %v96
    %116 = vmatprep.subr.bf16.mxu0 0
    %117 = vmatpush1.bf16.msra.mxu0 %v95
    %118 = vmatprep.subr.bf16.mxu0 0
    %119 = vmatpush1.bf16.msra.mxu0 %v94
    %120 = vmatprep.subr.bf16.mxu0 0
    %121 = vmatpush1.bf16.msra.mxu0 %v93
    %122 = vmatprep.subr.bf16.mxu0 0
    %123 = vmatpush1.bf16.msra.mxu0 %v92
    %124 = vmatprep.subr.bf16.mxu0 0
    %125 = vmatpush2.bf16.msra.mxu0 0
    %126 = vmatprep.subr.bf16.mxu0 0
    %127 = vmatpush2.bf16.msra.mxu0 0
    %128 = vmatprep.subr.bf16.mxu0 0
    %129 = vmatpush2.bf16.msra.mxu0 0
    %130 = vmatprep.subr.bf16.mxu0 0
    %131 = vmatpush2.bf16.msra.mxu0 0
    %132 = vmatprep.subr.bf16.mxu0 0
    %133 = vmatpush2.bf16.msra.mxu0 0
    %134 = vmatprep.subr.bf16.mxu0 0
    %135 = vmatpush2.bf16.msra.mxu0 0
    %136 = vmatprep.subr.bf16.mxu0 0
    %137 = vmatpush2.bf16.msra.mxu0 0
    %138 = vmatprep.subr.bf16.mxu0 0
    %139 = vmatpush2.bf16.msra.mxu0 0
    %140 = vmatprep.mubr.bf16.mxu0 0
    %141 = vmatmul.mubr.bf16.gmra.mxu0 %v58
    %v142 = vpop.f32.mrf.mxu0
    %v143 = vadd.f32 %v52, %v142
    %v144 = vpop.f32.mrf.mxu0
    %v145 = vpop.f32.mrf.mxu0
    %v146 = vadd.f32 %v52, %v145
    %v147 = vpop.f32.mrf.mxu0
    %148 = vdwg.mxu0
    %149 = vst [vmem:[%s3] sm:$0xff] %v143
    %150 = vst [vmem:[%s3 + $0x8] sm:$0xff] %v146
    // Predicated region
    $region18: #{linear_apply.1} parent=1 // pred_check
      _
    $region19: #{linear_apply.1} parent=1 // pred_check_branch
      %152 = sbr.rel (0) target = $region21
    $region20: #{linear_apply.1} parent=1 // pred_region
      _
    $region21: #{linear_apply.1} parent=1 // pred_fallthru
      _
    // Predicated region
    $region22: #{linear_apply.1} parent=1 // pred_check
      _
    $region23: #{linear_apply.1} parent=1 // pred_check_branch
      %154 = sbr.rel (0) target = $region25
    $region24: #{linear_apply.1} parent=1 // pred_region
      _
    $region25: #{linear_apply.1} parent=1 // pred_fallthru
      _
    %155 = vsyncpa [#allocation3], 1

</llo_original>
